<compile_context>
chip_gen: v6e
topology: v6e:2x2x1
jax: 0.10.0
libtpu: 0.0.40
codegen_flags: <defaults>
</compile_context>

<pallas_src>
import math

import jax
import jax.numpy as jnp
from jax.experimental import pallas as pl
from jax.experimental.pallas import tpu as pltpu


def _vmem_budget():
    """Returns (vmem_limit_bytes, per-step working-set target), per generation."""
    try:
        cap = int(pltpu.get_tpu_info().vmem_capacity_bytes)
    except Exception:
        cap = 64 * 1024 * 1024  # conservative: v7x per-TC physical VMEM
    limit = min(cap // 2, 64 * 1024 * 1024)   # v5e/v6e: 64 MiB, v7x: 32 MiB
    limit = max(limit, 16 * 1024 * 1024)
    return limit, limit // 2


def _make_flat_kernel(lane_offsets, lane_widths):
    """2-D path: copy each flattened input into its lane slice of the output block."""
    def kernel(*refs):
        *in_refs, out_ref = refs
        for r, lo, w in zip(in_refs, lane_offsets, lane_widths):
            # Lane offsets are multiples of 128 -> unmasked full-width stores.
            out_ref[:, lo:lo + w] = r[...].astype(out_ref.dtype)
    return kernel


def _make_chan_kernel(chan_offsets, chan_sizes):
    """3-D path: copy each input block into its channel slice of the output block."""
    def kernel(*refs):
        *in_refs, out_ref = refs
        for r, o, c in zip(in_refs, chan_offsets, chan_sizes):
            out_ref[:, o:o + c, :] = r[...].astype(out_ref.dtype)
    return kernel


def concat(xs, dimension=1):
    """Equivalent of torch.cat(xs, dimension) for same-rank tensors."""
    assert len(xs) >= 1, "torch.cat of an empty list is undefined"

    ndim = xs[0].ndim
    d = dimension % ndim

    # Non-concat dims must match (torch.cat requirement).
    for x in xs:
        assert x.ndim == ndim, (x.shape, xs[0].shape)
        for ax in range(ndim):
            if ax != d:
                assert x.shape[ax] == xs[0].shape[ax], (x.shape, xs[0].shape)

    # TODO(synk): jnp.result_type may differ from torch promotion in mixed
    # int/float corner cases; matching dtypes (the common torch case) is exact.
    out_dtype = jnp.result_type(*[x.dtype for x in xs])

    base = xs[0].shape
    outer = int(math.prod(base[:d]))
    inner = int(math.prod(base[d + 1:]))
    cs_all = [int(x.shape[d]) for x in xs]
    c_total = sum(cs_all)
    out_shape_full = base[:d] + (c_total,) + base[d + 1:]

    def _jnp_fallback():
        return jnp.concatenate([x.astype(out_dtype) for x in xs], axis=d)

    # Degenerate sizes: nothing for a kernel to do.
    if c_total == 0 or outer == 0 or inner == 0:
        return _jnp_fallback()

    # Drop zero-width inputs (would create degenerate BlockSpecs).
    pairs = [(x, c) for x, c in zip(xs, cs_all) if c > 0]
    cs = [c for _, c in pairs]
    if len(pairs) == 1:
        return pairs[0][0].astype(out_dtype)   # already the full result

    # Lane-sparse case (e.g. last-dim concat where inner == 1): a Pallas tile
    # would use <128 lanes with masked stores; jnp.concatenate is already at
    # the HBM roofline here.
    if inner < 128:
        return _jnp_fallback()

    itemsize = int(jnp.dtype(out_dtype).itemsize)
    min_itemsize = min(
        [itemsize] + [int(jnp.dtype(x.dtype).itemsize) for x, _ in pairs])
    sub = 8 * max(1, 4 // min_itemsize)        # sublane packing (8/16/32)

    vmem_limit, target = _vmem_budget()
    total_out_bytes = outer * c_total * inner * itemsize
    cost = pl.CostEstimate(flops=0, transcendentals=0,
                           bytes_accessed=2 * total_out_bytes)

    offsets = []
    off = 0
    for c in cs:
        offsets.append(off)
        off += c

    # ---------- Path A: lane-flattened 2-D copy (preferred) ----------------
    if inner % 128 == 0:
        row_bytes = 2 * c_total * inner * itemsize     # inputs + output, per outer row
        cap_rows = target // (2 * row_bytes)           # 2x: double buffering
        if cap_rows >= outer:
            t_outer = outer                            # full dim: always legal
        elif cap_rows >= sub:
            t_outer = (cap_rows // sub) * sub          # keep sublane dim aligned
        else:
            t_outer = 0                                # flattened row too big
        if t_outer > 0:
            xs_flat = [x.reshape(outer, c * inner) for x, c in pairs]  # reshape only
            widths = [c * inner for c in cs]
            lane_offs = [o * inner for o in offsets]   # multiples of 128
            grid = (pl.cdiv(outer, t_outer),)
            in_specs = [pl.BlockSpec((t_outer, w), lambda o: (o, 0)) for w in widths]
            out_spec = pl.BlockSpec((t_outer, c_total * inner), lambda o: (o, 0))
            out = pl.pallas_call(
                _make_flat_kernel(lane_offs, widths),
                out_shape=jax.ShapeDtypeStruct((outer, c_total * inner), out_dtype),
                grid=grid,
                in_specs=in_specs,
                out_specs=out_spec,
                compiler_params=pltpu.CompilerParams(
                    dimension_semantics=("parallel",),
                    vmem_limit_bytes=vmem_limit,
                ),
                cost_estimate=cost,
            )(*xs_flat)
            return out.reshape(out_shape_full)

    # ---------- Path B: 3-D (outer, C, inner), cdiv-tiled lanes -------------
    per_lane_bytes = 4 * c_total * itemsize            # in + out, double-buffered, t_outer=1
    t_inner = min(inner - inner % 128,
                  (target // per_lane_bytes) // 128 * 128)
    if t_inner >= 128:
        t_outer = max(1, min(outer, target // (4 * c_total * t_inner * itemsize)))
        xs_k = [x.reshape(outer, c, inner) for x, c in pairs]   # reshape only
        grid = (pl.cdiv(outer, t_outer), pl.cdiv(inner, t_inner))
        in_specs = [pl.BlockSpec((t_outer, c, t_inner), lambda o, t: (o, 0, t))
                    for c in cs]
        out_spec = pl.BlockSpec((t_outer, c_total, t_inner), lambda o, t: (o, 0, t))
        out = pl.pallas_call(
            _make_chan_kernel(offsets, cs),
            out_shape=jax.ShapeDtypeStruct((outer, c_total, inner), out_dtype),
            grid=grid,
            in_specs=in_specs,
            out_specs=out_spec,
            compiler_params=pltpu.CompilerParams(
                dimension_semantics=("parallel", "parallel"),
                vmem_limit_bytes=vmem_limit,
            ),
            cost_estimate=cost,
        )(*xs_k)
        return out.reshape(out_shape_full)

    # Awkward shapes (e.g. enormous channel totals): plain concat is roofline.
    return _jnp_fallback()


if __name__ == "__main__":
    key = jax.random.PRNGKey(0)
    k1, k2, k3, k4, k5 = jax.random.split(key, 5)

    # Channel concat (dimension=1) on NCHW; inner = H*W = 256 (multiple of 128)
    # -> exercises the lane-flattened Path A with unmasked 128-aligned stores.
    x1 = jax.random.normal(k1, (2, 4, 16, 16), dtype=jnp.float32)
    x2 = jax.random.normal(k2, (2, 6, 16, 16), dtype=jnp.float32)
    x3 = jax.random.normal(k3, (2, 2, 16, 16), dtype=jnp.float32)
    y = jax.block_until_ready(concat([x1, x2, x3], dimension=1))
    ref = jnp.concatenate([x1, x2, x3], axis=1)
    assert y.shape == ref.shape, (y.shape, ref.shape)
    assert y.dtype == ref.dtype
    assert bool(jnp.all(y == ref))

    # Channel concat with inner = 12*16 = 192 (>=128, not a multiple of 128)
    # -> exercises the cdiv-tiled 3-D Path B with a partial last lane block.
    a1 = jax.random.normal(k4, (2, 4, 12, 16), dtype=jnp.float32)
    a2 = jax.random.normal(k5, (2, 6, 12, 16), dtype=jnp.float32)
    y2 = jax.block_until_ready(concat([a1, a2], dimension=1))
    ref2 = jnp.concatenate([a1, a2], axis=1)
    assert y2.shape == ref2.shape and y2.dtype == ref2.dtype
    assert bool(jnp.all(y2 == ref2))

    # Last-dim concat (inner == 1): lane-sparse, routed to the jnp fallback.
    y3 = jax.block_until_ready(concat([x1, x1], dimension=-1))
    ref3 = jnp.concatenate([x1, x1], axis=-1)
    assert y3.shape == ref3.shape and y3.dtype == ref3.dtype
    assert bool(jnp.all(y3 == ref3))

    print("KERNEL_OK")
</pallas_src>

<mosaic_0001>
module attributes {stable_mosaic.version = 11 : i64} {
  func.func @kernel(%arg0: i32, %arg1: memref<2x1024xf32, #tpu.memory_space<vmem>>, %arg2: memref<2x1536xf32, #tpu.memory_space<vmem>>, %arg3: memref<2x512xf32, #tpu.memory_space<vmem>>, %arg4: memref<2x3072xf32, #tpu.memory_space<vmem>>) attributes {dimension_semantics = [#tpu.dimension_semantics<parallel>], iteration_bounds = array<i64: 1>, scalar_prefetch = 0 : i64, scratch_operands = 0 : i64, tpu.core_type = #tpu.core_type<tc>, window_params = [{transform_indices = @transform_0, window_bounds = array<i64: 2, 1024>}, {transform_indices = @transform_1, window_bounds = array<i64: 2, 1536>}, {transform_indices = @transform_2, window_bounds = array<i64: 2, 512>}, {transform_indices = @transform_3, window_bounds = array<i64: 2, 3072>}]} {
    %c0 = arith.constant 0 : index
    %c0_0 = arith.constant 0 : index
    %0 = vector.load %arg1[%c0, %c0_0] : memref<2x1024xf32, #tpu.memory_space<vmem>>, vector<2x1024xf32>
    %c0_1 = arith.constant 0 : index
    %c0_2 = arith.constant 0 : index
    %1 = vector.load %arg4[%c0_1, %c0_2] : memref<2x3072xf32, #tpu.memory_space<vmem>>, vector<2x1024xf32>
    tpu.vector_store %arg4[%c0_1, %c0_2], %0 {strides = array<i32>} : memref<2x3072xf32, #tpu.memory_space<vmem>>, vector<2x1024xf32>,
    %c0_3 = arith.constant 0 : index
    %c0_4 = arith.constant 0 : index
    %2 = vector.load %arg2[%c0_3, %c0_4] : memref<2x1536xf32, #tpu.memory_space<vmem>>, vector<2x1536xf32>
    %c0_5 = arith.constant 0 : index
    %c1024 = arith.constant 1024 : index
    %3 = vector.load %arg4[%c0_5, %c1024] : memref<2x3072xf32, #tpu.memory_space<vmem>>, vector<2x1536xf32>
    tpu.vector_store %arg4[%c0_5, %c1024], %2 {strides = array<i32>} : memref<2x3072xf32, #tpu.memory_space<vmem>>, vector<2x1536xf32>,
    %c0_6 = arith.constant 0 : index
    %c0_7 = arith.constant 0 : index
    %4 = vector.load %arg3[%c0_6, %c0_7] : memref<2x512xf32, #tpu.memory_space<vmem>>, vector<2x512xf32>
    %c0_8 = arith.constant 0 : index
    %c2560 = arith.constant 2560 : index
    %5 = vector.load %arg4[%c0_8, %c2560] : memref<2x3072xf32, #tpu.memory_space<vmem>>, vector<2x512xf32>
    tpu.vector_store %arg4[%c0_8, %c2560], %4 {strides = array<i32>} : memref<2x3072xf32, #tpu.memory_space<vmem>>, vector<2x512xf32>,
    return
  }
  func.func @transform_0(%arg0: i32) -> (i32, i32) {
    %c0_i32 = arith.constant 0 : i32
    %c0_i32_0 = arith.constant 0 : i32
    return %arg0, %c0_i32 : i32, i32
  }
  func.func @transform_1(%arg0: i32) -> (i32, i32) {
    %c0_i32 = arith.constant 0 : i32
    %c0_i32_0 = arith.constant 0 : i32
    return %arg0, %c0_i32 : i32, i32
  }
  func.func @transform_2(%arg0: i32) -> (i32, i32) {
    %c0_i32 = arith.constant 0 : i32
    %c0_i32_0 = arith.constant 0 : i32
    return %arg0, %c0_i32 : i32, i32
  }
  func.func @transform_3(%arg0: i32) -> (i32, i32) {
    %c0_i32 = arith.constant 0 : i32
    %c0_i32_0 = arith.constant 0 : i32
    return %arg0, %c0_i32 : i32, i32
  }
}

</mosaic_0001>

<llo_original>
// kernel: tpu_custom_call.1
$region0: #{tpu_custom_call.1}
  #allocation0 [shape = 'u32[]', space=smem, size = 0x4, offset = 0x4, fixed_abs, tag = 'smem constant byte address 0x4 - core index']
  #allocation1 [shape = 'u32[144,128]{1,0:T(1,128)}', space=vmem, size = 0x12000, scoped, tag = 'internal scratch']
  %s0 = inlined_call_operand.hbm [shape: f32[2,1024], index: 0, kind: input, shape index: {}]
  %s1 = inlined_call_operand.hbm [shape: f32[2,1536], index: 1, kind: input, shape index: {}]
  %s2 = inlined_call_operand.hbm [shape: f32[2,512], index: 2, kind: input, shape index: {}]
  %s3 = inlined_call_operand.hbm [shape: f32[2,3072], index: 3, kind: output, shape index: {}]
  %s4 = sld [smem:[#allocation0]]
  $region34: #{tpu_custom_call.1} parent=0
    _
  %s6 = ssub.s32 1, %s4
  %s7 = scalar_select 0, %s6, %s4
  $region1: #{tpu_custom_call.1} parent=0
    #allocation2 [shape = 'u8[8192]{0}', space=vmem, size = 0x2000, scoped, tag = 'input window, operand 0, single buffered']
    #allocation3 [shape = 's32[1]{0}', space=sflag, size = 0x4, scoped, tag = 'scoped memory for tpu_custom_call.1']
    #allocation4 [shape = 's32[1]{0}', space=sflag, size = 0x4, scoped, tag = 'scoped memory for tpu_custom_call.1']
    #allocation5 [shape = 'u8[12288]{0}', space=vmem, size = 0x3000, scoped, tag = 'input window, operand 1, single buffered']
    #allocation6 [shape = 's32[1]{0}', space=sflag, size = 0x4, scoped, tag = 'scoped memory for tpu_custom_call.1']
    #allocation7 [shape = 'u8[4096]{0}', space=vmem, size = 0x1000, scoped, tag = 'input window, operand 2, single buffered']
    #allocation8 [shape = 'u8[24576]{0}', space=vmem, size = 0x6000, scoped, tag = 'output window, operand 0, single buffered']
    %8 = vsyncpa [#allocation3], 0
    %9 = vsyncpa [#allocation6], 0
    %10 = vsyncpa [#allocation4], 0
    // Predicated region
    $region2: #{tpu_custom_call.1} parent=1 // pred_check
      _
    $region3: #{tpu_custom_call.1} parent=1 // pred_check_branch
      %12 = sbr.rel (0) target = $region5
    $region4: #{tpu_custom_call.1} parent=1 // pred_region
      %s14 = ssub.s32 256, 256
      %15 = vsyncadd [#allocation3], %s14
      %s17 = sshll.u32 [#allocation2], 4
      %s18 = int_to_ptr.vmem [resolvable:$true] %s17
      %20 = dma.hbm_to_vmem [thread:$0]  %s0, 256, %s18, [#allocation3]
    $region5: #{tpu_custom_call.1} parent=1 // pred_fallthru
      _
    // Predicated region
    $region6: #{tpu_custom_call.1} parent=1 // pred_check
      _
    $region7: #{tpu_custom_call.1} parent=1 // pred_check_branch
      %22 = sbr.rel (0) target = $region9
    $region8: #{tpu_custom_call.1} parent=1 // pred_region
      %s24 = ssub.s32 384, 384
      %25 = vsyncadd [#allocation6], %s24
      %s27 = sshll.u32 [#allocation5], 4
      %s28 = int_to_ptr.vmem [resolvable:$true] %s27
      %30 = dma.hbm_to_vmem [thread:$0]  %s1, 384, %s28, [#allocation6]
    $region9: #{tpu_custom_call.1} parent=1 // pred_fallthru
      _
    // Predicated region
    $region10: #{tpu_custom_call.1} parent=1 // pred_check
      _
    $region11: #{tpu_custom_call.1} parent=1 // pred_check_branch
      %32 = sbr.rel (0) target = $region13
    $region12: #{tpu_custom_call.1} parent=1 // pred_region
      %s34 = ssub.s32 128, 128
      %35 = vsyncadd [#allocation6], %s34
      %s37 = sshll.u32 [#allocation7], 4
      %s38 = int_to_ptr.vmem [resolvable:$true] %s37
      %40 = dma.hbm_to_vmem [thread:$0]  %s2, 128, %s38, [#allocation6]
    $region13: #{tpu_custom_call.1} parent=1 // pred_fallthru
      _
    // Predicated region
    $region14: #{tpu_custom_call.1} parent=1 // pred_check
      _
    $region15: #{tpu_custom_call.1} parent=1 // pred_check_branch
      %42 = sbr.rel (0) target = $region17
    $region16: #{tpu_custom_call.1} parent=1 // pred_region
      %43 = dma.done [#allocation3], 256
    $region17: #{tpu_custom_call.1} parent=1 // pred_fallthru
      _
    // Predicated region
    $region18: #{tpu_custom_call.1} parent=1 // pred_check
      _
    $region19: #{tpu_custom_call.1} parent=1 // pred_check_branch
      %45 = sbr.rel (0) target = $region21
    $region20: #{tpu_custom_call.1} parent=1 // pred_region
      %46 = dma.done [#allocation6], 384
    $region21: #{tpu_custom_call.1} parent=1 // pred_fallthru
      _
    // Predicated region
    $region22: #{tpu_custom_call.1} parent=1 // pred_check
      _
    $region23: #{tpu_custom_call.1} parent=1 // pred_check_branch
      %48 = sbr.rel (0) target = $region25
    $region24: #{tpu_custom_call.1} parent=1 // pred_region
      %49 = dma.done [#allocation6], 128
    $region25: #{tpu_custom_call.1} parent=1 // pred_fallthru
      _
    %v50 = vld [vmem:[#allocation2] sm:$0xff]
    %v51 = vld [vmem:[#allocation2 + $0x8] sm:$0xff]
    %52 = vst [vmem:[#allocation8] sm:$0xff] %v50
    %53 = vst [vmem:[#allocation8 + $0x8] sm:$0xff] %v51
    %v54 = vld [vmem:[#allocation5] sm:$0xff]
    %v55 = vld [vmem:[#allocation5 + $0x8] sm:$0xff]
    %v56 = vld [vmem:[#allocation5 + $0x10] sm:$0xff]
    %57 = vst [vmem:[#allocation8 + $0x10] sm:$0xff] %v54
    %58 = vst [vmem:[#allocation8 + $0x18] sm:$0xff] %v55
    %59 = vst [vmem:[#allocation8 + $0x20] sm:$0xff] %v56
    %v60 = vld [vmem:[#allocation7] sm:$0xff]
    %61 = vst [vmem:[#allocation8 + $0x28] sm:$0xff] %v60
    // Predicated region
    $region26: #{tpu_custom_call.1} parent=1 // pred_check
      _
    $region27: #{tpu_custom_call.1} parent=1 // pred_check_branch
      %63 = sbr.rel (0) target = $region29
    $region28: #{tpu_custom_call.1} parent=1 // pred_region
      %s65 = ssub.s32 768, 768
      %66 = vsyncadd [#allocation4], %s65
      %s68 = sshll.u32 [#allocation8], 4
      %s69 = int_to_ptr.vmem [resolvable:$true] %s68
      %71 = dma.vmem_to_hbm [thread:$0]  %s69, 768, %s3, [#allocation4]
    $region29: #{tpu_custom_call.1} parent=1 // pred_fallthru
      _
    // Predicated region
    $region30: #{tpu_custom_call.1} parent=1 // pred_check
      _
    $region31: #{tpu_custom_call.1} parent=1 // pred_check_branch
      %73 = sbr.rel (0) target = $region33
    $region32: #{tpu_custom_call.1} parent=1 // pred_region
      %74 = dma.done [#allocation4], 768
    $region33: #{tpu_custom_call.1} parent=1 // pred_fallthru
      _
    %75 = vsyncpa [#allocation3], 1
    %76 = vsyncpa [#allocation6], 1
    %77 = vsyncpa [#allocation4], 1

</llo_original>
